<compile_context>
chip_gen: v6e
topology: v6e:2x2x1
jax: 0.10.0
libtpu: 0.0.40
codegen_flags: <defaults>
</compile_context>

<pallas_src>
import functools

import jax
import jax.numpy as jnp
from jax import lax
from jax.experimental import pallas as pl
from jax.experimental.pallas import tpu as pltpu

EPS = 1e-5


def _round_up(x, m):
    return (x + m - 1) // m * m


def _transition_down_kernel(xw_ref, mean_ref, w_ref, b_ref, o_ref):
    """Per-tile body.

    xw_ref  : (4, TP, Cp) f32  -- 2x2 pooling-window positions, channel padded
    mean_ref: (1, Cp)     f32  -- per-channel batch mean (BN stats hoisted)
    w_ref   : (Cp, Cp)    f32  -- conv1x1 weight with BN scale pre-folded
    b_ref   : (1, Cp)     f32  -- conv bias
    o_ref   : (TP, Cp)    f32  -- pooled output tile (lane-dense, channels last)
    """
    m = mean_ref[...]
    w = w_ref[...]

    def window_matmul(k):
        xr = jnp.maximum(xw_ref[k] - m, 0.0)                 # BN shift + ReLU
        return jnp.dot(xr, w, preferred_element_type=jnp.float32)

    acc = window_matmul(0)
    for k in range(1, 4):                                     # static unroll
        acc = jnp.maximum(acc, window_matmul(k))              # MaxPool2d 2x2

    # TODO(synk): Dropout(p=0.2) implemented as identity (eval semantics);
    # training-mode dropout is random and has no deterministic reference.
    o_ref[...] = acc + b_ref[...]                             # bias after max


@functools.partial(jax.jit, static_argnames=("tile_rows",))
def transition_down(x_nchw, conv_w, conv_b, *, tile_rows=512):
    """x_nchw: (N, C, H, W) f32; conv_w: (C, C, 1, 1); conv_b: (C,)."""
    N, C, H, W = x_nchw.shape
    assert H % 2 == 0 and W % 2 == 0, "MaxPool2d(2,2) path assumes even H, W"
    Ho, Wo = H // 2, W // 2
    P = N * Ho * Wo

    x = x_nchw.astype(jnp.float32)

    # --- BatchNorm2d statistics (training mode, biased variance), hoisted ---
    mean = jnp.mean(x, axis=(0, 2, 3))                                  # (C,)
    var = jnp.mean(jnp.square(x - mean[None, :, None, None]), axis=(0, 2, 3))
    scale = lax.rsqrt(var + EPS)                                        # (C,) > 0

    # Fold the positive BN scale through ReLU into the conv weight.
    w2 = conv_w.reshape(C, C).astype(jnp.float32)                       # (Cout, Cin)
    w_folded = scale[:, None] * w2.T                                    # (Cin, Cout)

    # --- lane-dense channel padding & P-tiling ---
    Cp = max(128, _round_up(C, 128))
    TP = min(tile_rows, _round_up(P, 8))
    P_pad = _round_up(P, TP)

    # NCHW -> NHWC (channels last), zero-pad channels.
    x_nhwc = jnp.transpose(x, (0, 2, 3, 1))
    x_nhwc = jnp.pad(x_nhwc, ((0, 0), (0, 0), (0, 0), (0, Cp - C)))

    # Gather the 4 positions of every 2x2 pooling window with one fused
    # reshape + transpose: (4, P, Cp).
    xw = (x_nhwc.reshape(N, Ho, 2, Wo, 2, Cp)
                .transpose(2, 4, 0, 1, 3, 5)
                .reshape(4, P, Cp))
    xw = jnp.pad(xw, ((0, 0), (0, P_pad - P), (0, 0)))

    mean_p = jnp.pad(mean, (0, Cp - C)).reshape(1, Cp)
    w_p = jnp.pad(w_folded, ((0, Cp - C), (0, Cp - C)))
    b_p = jnp.pad(conv_b.astype(jnp.float32), (0, Cp - C)).reshape(1, Cp)

    out = pl.pallas_call(
        _transition_down_kernel,
        out_shape=jax.ShapeDtypeStruct((P_pad, Cp), jnp.float32),
        grid=(P_pad // TP,),
        in_specs=[
            pl.BlockSpec((4, TP, Cp), lambda i: (0, i, 0)),   # activations tile
            pl.BlockSpec((1, Cp), lambda i: (0, 0)),          # mean (resident)
            pl.BlockSpec((Cp, Cp), lambda i: (0, 0)),         # folded weight
            pl.BlockSpec((1, Cp), lambda i: (0, 0)),          # bias
        ],
        out_specs=pl.BlockSpec((TP, Cp), lambda i: (i, 0)),
        compiler_params=pltpu.CompilerParams(
            dimension_semantics=("parallel",),                # megacore over P
        ),
    )(xw, mean_p, w_p, b_p)

    # (P_pad, Cp) -> (P, C) -> (N, Ho, Wo, C) -> NCHW
    return out[:P, :C].reshape(N, Ho, Wo, C).transpose(0, 3, 1, 2)


def transition_down_reference(x, conv_w, conv_b):
    """Pure-JAX reference with identical semantics (for verification)."""
    N, C, H, W = x.shape
    mean = jnp.mean(x, axis=(0, 2, 3), keepdims=True)
    var = jnp.mean((x - mean) ** 2, axis=(0, 2, 3), keepdims=True)
    xn = (x - mean) / jnp.sqrt(var + EPS)
    xr = jnp.maximum(xn, 0.0)
    w = conv_w.reshape(C, C)
    y = jnp.einsum("nchw,oc->nohw", xr, w) + conv_b[None, :, None, None]
    return jnp.max(y.reshape(N, C, H // 2, 2, W // 2, 2), axis=(3, 5))


if __name__ == "__main__":
    key = jax.random.PRNGKey(0)
    k_x, k_w, k_b = jax.random.split(key, 3)

    N, C, H, W = 2, 4, 16, 16
    x = jax.random.normal(k_x, (N, C, H, W), dtype=jnp.float32)
    # Deterministic synthetic Conv2d(4, 4, kernel_size=1) parameters.
    conv_w = jax.random.normal(k_w, (C, C, 1, 1), dtype=jnp.float32) * 0.5
    conv_b = jax.random.normal(k_b, (C,), dtype=jnp.float32) * 0.1

    out = jax.block_until_ready(transition_down(x, conv_w, conv_b))
    ref = jax.block_until_ready(transition_down_reference(x, conv_w, conv_b))

    assert out.shape == (N, C, H // 2, W // 2), out.shape
    assert jnp.allclose(out, ref, atol=1e-4, rtol=1e-4), float(
        jnp.max(jnp.abs(out - ref)))
    print("KERNEL_OK")
</pallas_src>

<mosaic_0001>
module attributes {stable_mosaic.version = 11 : i64} {
  func.func @_transition_down_kernel(%arg0: i32, %arg1: memref<4x128x128xf32, #tpu.memory_space<vmem>>, %arg2: memref<1x128xf32, #tpu.memory_space<vmem>>, %arg3: memref<128x128xf32, #tpu.memory_space<vmem>>, %arg4: memref<1x128xf32, #tpu.memory_space<vmem>>, %arg5: memref<128x128xf32, #tpu.memory_space<vmem>>) attributes {dimension_semantics = [#tpu.dimension_semantics<parallel>], iteration_bounds = array<i64: 1>, scalar_prefetch = 0 : i64, scratch_operands = 0 : i64, tpu.core_type = #tpu.core_type<tc>, window_params = [{transform_indices = @transform_0, window_bounds = array<i64: 4, 128, 128>}, {pipeline_mode = #tpu.pipeline_mode<synchronous>, transform_indices = @transform_1, window_bounds = array<i64: 1, 128>}, {pipeline_mode = #tpu.pipeline_mode<synchronous>, transform_indices = @transform_2, window_bounds = array<i64: 128, 128>}, {pipeline_mode = #tpu.pipeline_mode<synchronous>, transform_indices = @transform_3, window_bounds = array<i64: 1, 128>}, {transform_indices = @transform_4, window_bounds = array<i64: 128, 128>}]} {
    %c0 = arith.constant 0 : index
    %c0_0 = arith.constant 0 : index
    %0 = vector.load %arg2[%c0, %c0_0] : memref<1x128xf32, #tpu.memory_space<vmem>>, vector<1x128xf32>
    %c0_1 = arith.constant 0 : index
    %c0_2 = arith.constant 0 : index
    %1 = vector.load %arg3[%c0_1, %c0_2] : memref<128x128xf32, #tpu.memory_space<vmem>>, vector<128x128xf32>
    %c0_3 = arith.constant 0 : index
    %c0_4 = arith.constant 0 : index
    %c0_5 = arith.constant 0 : index
    %2 = vector.load %arg1[%c0_3, %c0_4, %c0_5] : memref<4x128x128xf32, #tpu.memory_space<vmem>>, vector<1x128x128xf32>
    %3 = vector.shape_cast %2 : vector<1x128x128xf32> to vector<128x128xf32>
    %4 = vector.broadcast %0 : vector<1x128xf32> to vector<128x128xf32>
    %5 = arith.subf %3, %4 : vector<128x128xf32>
    %cst = arith.constant 0.000000e+00 : f32
    %6 = vector.broadcast %cst : f32 to vector<128x128xf32>
    %7 = arith.maximumf %5, %6 : vector<128x128xf32>
    %cst_6 = arith.constant dense<0.000000e+00> : vector<128x128xf32>
    %8 = tpu.matmul %7, %1, %cst_6 {dimension_numbers = #tpu.dot_dimension_numbers<[1], [0], [0], [1], [0, 0, 1, 1], [], []>} : vector<128x128xf32>, vector<128x128xf32>, vector<128x128xf32> -> vector<128x128xf32>
    %c1 = arith.constant 1 : index
    %c0_7 = arith.constant 0 : index
    %c0_8 = arith.constant 0 : index
    %9 = vector.load %arg1[%c1, %c0_7, %c0_8] : memref<4x128x128xf32, #tpu.memory_space<vmem>>, vector<1x128x128xf32>
    %10 = vector.shape_cast %9 : vector<1x128x128xf32> to vector<128x128xf32>
    %11 = vector.broadcast %0 : vector<1x128xf32> to vector<128x128xf32>
    %12 = arith.subf %10, %11 : vector<128x128xf32>
    %cst_9 = arith.constant 0.000000e+00 : f32
    %13 = vector.broadcast %cst_9 : f32 to vector<128x128xf32>
    %14 = arith.maximumf %12, %13 : vector<128x128xf32>
    %cst_10 = arith.constant dense<0.000000e+00> : vector<128x128xf32>
    %15 = tpu.matmul %14, %1, %cst_10 {dimension_numbers = #tpu.dot_dimension_numbers<[1], [0], [0], [1], [0, 0, 1, 1], [], []>} : vector<128x128xf32>, vector<128x128xf32>, vector<128x128xf32> -> vector<128x128xf32>
    %16 = arith.maximumf %8, %15 : vector<128x128xf32>
    %c2 = arith.constant 2 : index
    %c0_11 = arith.constant 0 : index
    %c0_12 = arith.constant 0 : index
    %17 = vector.load %arg1[%c2, %c0_11, %c0_12] : memref<4x128x128xf32, #tpu.memory_space<vmem>>, vector<1x128x128xf32>
    %18 = vector.shape_cast %17 : vector<1x128x128xf32> to vector<128x128xf32>
    %19 = vector.broadcast %0 : vector<1x128xf32> to vector<128x128xf32>
    %20 = arith.subf %18, %19 : vector<128x128xf32>
    %cst_13 = arith.constant 0.000000e+00 : f32
    %21 = vector.broadcast %cst_13 : f32 to vector<128x128xf32>
    %22 = arith.maximumf %20, %21 : vector<128x128xf32>
    %cst_14 = arith.constant dense<0.000000e+00> : vector<128x128xf32>
    %23 = tpu.matmul %22, %1, %cst_14 {dimension_numbers = #tpu.dot_dimension_numbers<[1], [0], [0], [1], [0, 0, 1, 1], [], []>} : vector<128x128xf32>, vector<128x128xf32>, vector<128x128xf32> -> vector<128x128xf32>
    %24 = arith.maximumf %16, %23 : vector<128x128xf32>
    %c3 = arith.constant 3 : index
    %c0_15 = arith.constant 0 : index
    %c0_16 = arith.constant 0 : index
    %25 = vector.load %arg1[%c3, %c0_15, %c0_16] : memref<4x128x128xf32, #tpu.memory_space<vmem>>, vector<1x128x128xf32>
    %26 = vector.shape_cast %25 : vector<1x128x128xf32> to vector<128x128xf32>
    %27 = vector.broadcast %0 : vector<1x128xf32> to vector<128x128xf32>
    %28 = arith.subf %26, %27 : vector<128x128xf32>
    %cst_17 = arith.constant 0.000000e+00 : f32
    %29 = vector.broadcast %cst_17 : f32 to vector<128x128xf32>
    %30 = arith.maximumf %28, %29 : vector<128x128xf32>
    %cst_18 = arith.constant dense<0.000000e+00> : vector<128x128xf32>
    %31 = tpu.matmul %30, %1, %cst_18 {dimension_numbers = #tpu.dot_dimension_numbers<[1], [0], [0], [1], [0, 0, 1, 1], [], []>} : vector<128x128xf32>, vector<128x128xf32>, vector<128x128xf32> -> vector<128x128xf32>
    %32 = arith.maximumf %24, %31 : vector<128x128xf32>
    %c0_19 = arith.constant 0 : index
    %c0_20 = arith.constant 0 : index
    %33 = vector.load %arg4[%c0_19, %c0_20] : memref<1x128xf32, #tpu.memory_space<vmem>>, vector<1x128xf32>
    %34 = vector.broadcast %33 : vector<1x128xf32> to vector<128x128xf32>
    %35 = arith.addf %32, %34 : vector<128x128xf32>
    %c0_21 = arith.constant 0 : index
    %c0_22 = arith.constant 0 : index
    %36 = vector.load %arg5[%c0_21, %c0_22] : memref<128x128xf32, #tpu.memory_space<vmem>>, vector<128x128xf32>
    tpu.vector_store %arg5[%c0_21, %c0_22], %35 {strides = array<i32>} : memref<128x128xf32, #tpu.memory_space<vmem>>, vector<128x128xf32>,
    return
  }
  func.func @transform_0(%arg0: i32) -> (i32, i32, i32) {
    %c0_i32 = arith.constant 0 : i32
    %c0_i32_0 = arith.constant 0 : i32
    %c0_i32_1 = arith.constant 0 : i32
    return %c0_i32, %arg0, %c0_i32_0 : i32, i32, i32
  }
  func.func @transform_1(%arg0: i32) -> (i32, i32) {
    %c0_i32 = arith.constant 0 : i32
    %c0_i32_0 = arith.constant 0 : i32
    %c0_i32_1 = arith.constant 0 : i32
    return %c0_i32, %c0_i32_0 : i32, i32
  }
  func.func @transform_2(%arg0: i32) -> (i32, i32) {
    %c0_i32 = arith.constant 0 : i32
    %c0_i32_0 = arith.constant 0 : i32
    %c0_i32_1 = arith.constant 0 : i32
    return %c0_i32, %c0_i32_0 : i32, i32
  }
  func.func @transform_3(%arg0: i32) -> (i32, i32) {
    %c0_i32 = arith.constant 0 : i32
    %c0_i32_0 = arith.constant 0 : i32
    %c0_i32_1 = arith.constant 0 : i32
    return %c0_i32, %c0_i32_0 : i32, i32
  }
  func.func @transform_4(%arg0: i32) -> (i32, i32) {
    %c0_i32 = arith.constant 0 : i32
    %c0_i32_0 = arith.constant 0 : i32
    return %arg0, %c0_i32 : i32, i32
  }
}

</mosaic_0001>

<llo_original>
// kernel: transition_down.1
$region0: #{transition_down.1}
  #allocation0 [shape = 'u32[]', space=smem, size = 0x4, offset = 0x4, fixed_abs, tag = 'smem constant byte address 0x4 - core index']
  #allocation1 [shape = 'u32[144,128]{1,0:T(1,128)}', space=vmem, size = 0x12000, scoped, tag = 'internal scratch']
  %s0 = inlined_call_operand.vmem [shape: f32[4,128,128], index: 0, kind: input, shape index: {}]
  %s1 = inlined_call_operand.vmem [shape: f32[1,128], index: 1, kind: input, shape index: {}]
  %s2 = inlined_call_operand.vmem [shape: f32[128,128], index: 2, kind: input, shape index: {}]
  %s3 = inlined_call_operand.vmem [shape: f32[1,128], index: 3, kind: input, shape index: {}]
  %s4 = inlined_call_operand.vmem [shape: f32[128,128], index: 4, kind: output, shape index: {}]
  %s5 = sld [smem:[#allocation0]]
  $region26: #{transition_down.1} parent=0
    _
  %s7 = ssub.s32 1, %s5
  %s8 = scalar_select 0, %s7, %s5
  // Predicated region
  $region2: #{transition_down.1} parent=0 // pred_check
    _
  $region3: #{transition_down.1} parent=0 // pred_check_branch
    %10 = sbr.rel (0) target = $region5
  $region4: #{transition_down.1} parent=0 // pred_region
    _
  $region5: #{transition_down.1} parent=0 // pred_fallthru
    _
  // Predicated region
  $region6: #{transition_down.1} parent=0 // pred_check
    _
  $region7: #{transition_down.1} parent=0 // pred_check_branch
    %12 = sbr.rel (0) target = $region9
  $region8: #{transition_down.1} parent=0 // pred_region
    _
  $region9: #{transition_down.1} parent=0 // pred_fallthru
    _
  // Predicated region
  $region10: #{transition_down.1} parent=0 // pred_check
    _
  $region11: #{transition_down.1} parent=0 // pred_check_branch
    %14 = sbr.rel (0) target = $region13
  $region12: #{transition_down.1} parent=0 // pred_region
    _
  $region13: #{transition_down.1} parent=0 // pred_fallthru
    _
  // Predicated region
  $region14: #{transition_down.1} parent=0 // pred_check
    _
  $region15: #{transition_down.1} parent=0 // pred_check_branch
    %16 = sbr.rel (0) target = $region17
  $region16: #{transition_down.1} parent=0 // pred_region
    _
  $region17: #{transition_down.1} parent=0 // pred_fallthru
    _
  %v17 = vld [vmem:[%s1] sm:$0x1]
  %v18 = vld [vmem:[%s2] sm:$0xff]
  %v19 = vld [vmem:[%s2 + $0x8] sm:$0xff]
  %v20 = vld [vmem:[%s2 + $0x10] sm:$0xff]
  %v21 = vld [vmem:[%s2 + $0x18] sm:$0xff]
  %v22 = vld [vmem:[%s2 + $0x20] sm:$0xff]
  %v23 = vld [vmem:[%s2 + $0x28] sm:$0xff]
  %v24 = vld [vmem:[%s2 + $0x30] sm:$0xff]
  %v25 = vld [vmem:[%s2 + $0x38] sm:$0xff]
  %v26 = vld [vmem:[%s2 + $0x40] sm:$0xff]
  %v27 = vld [vmem:[%s2 + $0x48] sm:$0xff]
  %v28 = vld [vmem:[%s2 + $0x50] sm:$0xff]
  %v29 = vld [vmem:[%s2 + $0x58] sm:$0xff]
  %v30 = vld [vmem:[%s2 + $0x60] sm:$0xff]
  %v31 = vld [vmem:[%s2 + $0x68] sm:$0xff]
  %v32 = vld [vmem:[%s2 + $0x70] sm:$0xff]
  %v33 = vld [vmem:[%s2 + $0x78] sm:$0xff]
  %v34 = vld [vmem:[%s0] sm:$0xff]
  %v35 = vld [vmem:[%s0 + $0x8] sm:$0xff]
  %v36 = vld [vmem:[%s0 + $0x10] sm:$0xff]
  %v37 = vld [vmem:[%s0 + $0x18] sm:$0xff]
  %v38 = vld [vmem:[%s0 + $0x20] sm:$0xff]
  %v39 = vld [vmem:[%s0 + $0x28] sm:$0xff]
  %v40 = vld [vmem:[%s0 + $0x30] sm:$0xff]
  %v41 = vld [vmem:[%s0 + $0x38] sm:$0xff]
  %v42 = vld [vmem:[%s0 + $0x40] sm:$0xff]
  %v43 = vld [vmem:[%s0 + $0x48] sm:$0xff]
  %v44 = vld [vmem:[%s0 + $0x50] sm:$0xff]
  %v45 = vld [vmem:[%s0 + $0x58] sm:$0xff]
  %v46 = vld [vmem:[%s0 + $0x60] sm:$0xff]
  %v47 = vld [vmem:[%s0 + $0x68] sm:$0xff]
  %v48 = vld [vmem:[%s0 + $0x70] sm:$0xff]
  %v49 = vld [vmem:[%s0 + $0x78] sm:$0xff]
  %v51 = vlaneseq
  %v52 = vshrl.u32 %v51, 7
  %v53 = vsub.s32 0, %v52
  %v54 = vrot.slane %v17, %v53
  %v56 = vsub.f32 %v34, %v54
  %v57 = vsub.f32 %v35, %v54
  %v58 = vsub.f32 %v36, %v54
  %v59 = vsub.f32 %v37, %v54
  %v60 = vsub.f32 %v38, %v54
  %v61 = vsub.f32 %v39, %v54
  %v62 = vsub.f32 %v40, %v54
  %v63 = vsub.f32 %v41, %v54
  %v64 = vsub.f32 %v42, %v54
  %v65 = vsub.f32 %v43, %v54
  %v66 = vsub.f32 %v44, %v54
  %v67 = vsub.f32 %v45, %v54
  %v68 = vsub.f32 %v46, %v54
  %v69 = vsub.f32 %v47, %v54
  %v70 = vsub.f32 %v48, %v54
  %v71 = vsub.f32 %v49, %v54
  %v72 = vmax.f32 %v56, 0.0
  %v73 = vmax.f32 %v57, 0.0
  %v74 = vmax.f32 %v58, 0.0
  %v75 = vmax.f32 %v59, 0.0
  %v76 = vmax.f32 %v60, 0.0
  %v77 = vmax.f32 %v61, 0.0
  %v78 = vmax.f32 %v62, 0.0
  %v79 = vmax.f32 %v63, 0.0
  %v80 = vmax.f32 %v64, 0.0
  %v81 = vmax.f32 %v65, 0.0
  %v82 = vmax.f32 %v66, 0.0
  %v83 = vmax.f32 %v67, 0.0
  %v84 = vmax.f32 %v68, 0.0
  %v85 = vmax.f32 %v69, 0.0
  %v86 = vmax.f32 %v70, 0.0
  %v87 = vmax.f32 %v71, 0.0
  %88 = vmatprep.subr.mxu0 0.0
  %89 = vmatpush1.msra.mxu0 %v33
  %90 = vmatprep.subr.mxu0 0.0
  %91 = vmatpush1.msra.mxu0 %v32
  %92 = vmatprep.subr.mxu0 0.0
  %93 = vmatpush1.msra.mxu0 %v31
  %94 = vmatprep.subr.mxu0 0.0
  %95 = vmatpush1.msra.mxu0 %v30
  %96 = vmatprep.subr.mxu0 0.0
  %97 = vmatpush1.msra.mxu0 %v29
  %98 = vmatprep.subr.mxu0 0.0
  %99 = vmatpush1.msra.mxu0 %v28
  %100 = vmatprep.subr.mxu0 0.0
  %101 = vmatpush1.msra.mxu0 %v27
  %102 = vmatprep.subr.mxu0 0.0
  %103 = vmatpush1.msra.mxu0 %v26
  %104 = vmatprep.subr.mxu0 0.0
  %105 = vmatpush1.msra.mxu0 %v25
  %106 = vmatprep.subr.mxu0 0.0
  %107 = vmatpush1.msra.mxu0 %v24
  %108 = vmatprep.subr.mxu0 0.0
  %109 = vmatpush1.msra.mxu0 %v23
  %110 = vmatprep.subr.mxu0 0.0
  %111 = vmatpush1.msra.mxu0 %v22
  %112 = vmatprep.subr.mxu0 0.0
  %113 = vmatpush1.msra.mxu0 %v21
  %114 = vmatprep.subr.mxu0 0.0
  %115 = vmatpush1.msra.mxu0 %v20
  %116 = vmatprep.subr.mxu0 0.0
  %117 = vmatpush1.msra.mxu0 %v19
  %118 = vmatprep.subr.mxu0 0.0
  %119 = vmatpush1.msra.mxu0 %v18
  %120 = vmatprep.subr.mxu0 0.0
  %121 = vmatpush2.msra.mxu0 0.0
  %122 = vmatprep.subr.mxu0 0.0
  %123 = vmatpush2.msra.mxu0 0.0
  %124 = vmatprep.subr.mxu0 0.0
  %125 = vmatpush2.msra.mxu0 0.0
  %126 = vmatprep.subr.mxu0 0.0
  %127 = vmatpush2.msra.mxu0 0.0
  %128 = vmatprep.subr.mxu0 0.0
  %129 = vmatpush2.msra.mxu0 0.0
  %130 = vmatprep.subr.mxu0 0.0
  %131 = vmatpush2.msra.mxu0 0.0
  %132 = vmatprep.subr.mxu0 0.0
  %133 = vmatpush2.msra.mxu0 0.0
  %134 = vmatprep.subr.mxu0 0.0
  %135 = vmatpush2.msra.mxu0 0.0
  %136 = vmatprep.subr.mxu0 0.0
  %137 = vmatpush2.msra.mxu0 0.0
  %138 = vmatprep.subr.mxu0 0.0
  %139 = vmatpush2.msra.mxu0 0.0
  %140 = vmatprep.subr.mxu0 0.0
  %141 = vmatpush2.msra.mxu0 0.0
  %142 = vmatprep.subr.mxu0 0.0
  %143 = vmatpush2.msra.mxu0 0.0
  %144 = vmatprep.subr.mxu0 0.0
  %145 = vmatpush2.msra.mxu0 0.0
  %146 = vmatprep.subr.mxu0 0.0
  %147 = vmatpush2.msra.mxu0 0.0
  %148 = vmatprep.subr.mxu0 0.0
  %149 = vmatpush2.msra.mxu0 0.0
  %150 = vmatprep.subr.mxu0 0.0
  %151 = vmatpush2.msra.mxu0 0.0
  %152 = vmatprep.mubr.f32.mxu0 0.0
  %153 = vmatmul.mubr.f32.gmra.mxu0 %v72
  %v154 = vpop.f32.mrf.mxu0
  %v155 = vadd.f32 0.0, %v154
  %v156 = vpop.f32.mrf.mxu0
  %157 = vmatprep.mubr.f32.mxu0 0.0
  %158 = vmatmul.mubr.f32.gmra.mxu0 %v73
  %v159 = vpop.f32.mrf.mxu0
  %v160 = vadd.f32 0.0, %v159
  %v161 = vpop.f32.mrf.mxu0
  %162 = vmatprep.mubr.f32.mxu0 0.0
  %163 = vmatmul.mubr.f32.gmra.mxu0 %v74
  %v164 = vpop.f32.mrf.mxu0
  %v165 = vadd.f32 0.0, %v164
  %v166 = vpop.f32.mrf.mxu0
  %167 = vmatprep.mubr.f32.mxu0 0.0
  %168 = vmatmul.mubr.f32.gmra.mxu0 %v75
  %v169 = vpop.f32.mrf.mxu0
  %v170 = vadd.f32 0.0, %v169
  %v171 = vpop.f32.mrf.mxu0
  %172 = vmatprep.mubr.f32.mxu0 0.0
  %173 = vmatmul.mubr.f32.gmra.mxu0 %v76
  %v174 = vpop.f32.mrf.mxu0
  %v175 = vadd.f32 0.0, %v174
  %v176 = vpop.f32.mrf.mxu0
  %177 = vmatprep.mubr.f32.mxu0 0.0
  %178 = vmatmul.mubr.f32.gmra.mxu0 %v77
  %v179 = vpop.f32.mrf.mxu0
  %v180 = vadd.f32 0.0, %v179
  %v181 = vpop.f32.mrf.mxu0
  %182 = vmatprep.mubr.f32.mxu0 0.0
  %183 = vmatmul.mubr.f32.gmra.mxu0 %v78
  %v184 = vpop.f32.mrf.mxu0
  %v185 = vadd.f32 0.0, %v184
  %v186 = vpop.f32.mrf.mxu0
  %187 = vmatprep.mubr.f32.mxu0 0.0
  %188 = vmatmul.mubr.f32.gmra.mxu0 %v79
  %v189 = vpop.f32.mrf.mxu0
  %v190 = vadd.f32 0.0, %v189
  %v191 = vpop.f32.mrf.mxu0
  %192 = vmatprep.mubr.f32.mxu0 0.0
  %193 = vmatmul.mubr.f32.gmra.mxu0 %v80
  %v194 = vpop.f32.mrf.mxu0
  %v195 = vadd.f32 0.0, %v194
  %v196 = vpop.f32.mrf.mxu0
  %197 = vmatprep.mubr.f32.mxu0 0.0
  %198 = vmatmul.mubr.f32.gmra.mxu0 %v81
  %v199 = vpop.f32.mrf.mxu0
  %v200 = vadd.f32 0.0, %v199
  %v201 = vpop.f32.mrf.mxu0
  %202 = vmatprep.mubr.f32.mxu0 0.0
  %203 = vmatmul.mubr.f32.gmra.mxu0 %v82
  %v204 = vpop.f32.mrf.mxu0
  %v205 = vadd.f32 0.0, %v204
  %v206 = vpop.f32.mrf.mxu0
  %207 = vmatprep.mubr.f32.mxu0 0.0
  %208 = vmatmul.mubr.f32.gmra.mxu0 %v83
  %v209 = vpop.f32.mrf.mxu0
  %v210 = vadd.f32 0.0, %v209
  %v211 = vpop.f32.mrf.mxu0
  %212 = vmatprep.mubr.f32.mxu0 0.0
  %213 = vmatmul.mubr.f32.gmra.mxu0 %v84
  %v214 = vpop.f32.mrf.mxu0
  %v215 = vadd.f32 0.0, %v214
  %v216 = vpop.f32.mrf.mxu0
  %217 = vmatprep.mubr.f32.mxu0 0.0
  %218 = vmatmul.mubr.f32.gmra.mxu0 %v85
  %v219 = vpop.f32.mrf.mxu0
  %v220 = vadd.f32 0.0, %v219
  %v221 = vpop.f32.mrf.mxu0
  %222 = vmatprep.mubr.f32.mxu0 0.0
  %223 = vmatmul.mubr.f32.gmra.mxu0 %v86
  %v224 = vpop.f32.mrf.mxu0
  %v225 = vadd.f32 0.0, %v224
  %v226 = vpop.f32.mrf.mxu0
  %227 = vmatprep.mubr.f32.mxu0 0.0
  %228 = vmatmul.mubr.f32.gmra.mxu0 %v87
  %v229 = vpop.f32.mrf.mxu0
  %v230 = vadd.f32 0.0, %v229
  %v231 = vpop.f32.mrf.mxu0
  %232 = vdwg.mxu0
  %s233 = scalar_lea.vmem %s0, 128
  %v234 = vld [vmem:[%s233] sm:$0xff]
  %v235 = vld [vmem:[%s233 + $0x8] sm:$0xff]
  %v236 = vld [vmem:[%s233 + $0x10] sm:$0xff]
  %v237 = vld [vmem:[%s233 + $0x18] sm:$0xff]
  %v238 = vld [vmem:[%s233 + $0x20] sm:$0xff]
  %v239 = vld [vmem:[%s233 + $0x28] sm:$0xff]
  %v240 = vld [vmem:[%s233 + $0x30] sm:$0xff]
  %v241 = vld [vmem:[%s233 + $0x38] sm:$0xff]
  %v242 = vld [vmem:[%s233 + $0x40] sm:$0xff]
  %v243 = vld [vmem:[%s233 + $0x48] sm:$0xff]
  %v244 = vld [vmem:[%s233 + $0x50] sm:$0xff]
  %v245 = vld [vmem:[%s233 + $0x58] sm:$0xff]
  %v246 = vld [vmem:[%s233 + $0x60] sm:$0xff]
  %v247 = vld [vmem:[%s233 + $0x68] sm:$0xff]
  %v248 = vld [vmem:[%s233 + $0x70] sm:$0xff]
  %v249 = vld [vmem:[%s233 + $0x78] sm:$0xff]
  %v250 = vsub.f32 %v234, %v54
  %v251 = vsub.f32 %v235, %v54
  %v252 = vsub.f32 %v236, %v54
  %v253 = vsub.f32 %v237, %v54
  %v254 = vsub.f32 %v238, %v54
  %v255 = vsub.f32 %v239, %v54
  %v256 = vsub.f32 %v240, %v54
  %v257 = vsub.f32 %v241, %v54
  %v258 = vsub.f32 %v242, %v54
  %v259 = vsub.f32 %v243, %v54
  %v260 = vsub.f32 %v244, %v54
  %v261 = vsub.f32 %v245, %v54
  %v262 = vsub.f32 %v246, %v54
  %v263 = vsub.f32 %v247, %v54
  %v264 = vsub.f32 %v248, %v54
  %v265 = vsub.f32 %v249, %v54
  %v266 = vmax.f32 %v250, 0.0
  %v267 = vmax.f32 %v251, 0.0
  %v268 = vmax.f32 %v252, 0.0
  %v269 = vmax.f32 %v253, 0.0
  %v270 = vmax.f32 %v254, 0.0
  %v271 = vmax.f32 %v255, 0.0
  %v272 = vmax.f32 %v256, 0.0
  %v273 = vmax.f32 %v257, 0.0
  %v274 = vmax.f32 %v258, 0.0
  %v275 = vmax.f32 %v259, 0.0
  %v276 = vmax.f32 %v260, 0.0
  %v277 = vmax.f32 %v261, 0.0
  %v278 = vmax.f32 %v262, 0.0
  %v279 = vmax.f32 %v263, 0.0
  %v280 = vmax.f32 %v264, 0.0
  %v281 = vmax.f32 %v265, 0.0
  %282 = vmatprep.subr.mxu0 0.0
  %283 = vmatpush1.msra.mxu0 %v33
  %284 = vmatprep.subr.mxu0 0.0
  %285 = vmatpush1.msra.mxu0 %v32
  %286 = vmatprep.subr.mxu0 0.0
  %287 = vmatpush1.msra.mxu0 %v31
  %288 = vmatprep.subr.mxu0 0.0
  %289 = vmatpush1.msra.mxu0 %v30
  %290 = vmatprep.subr.mxu0 0.0
  %291 = vmatpush1.msra.mxu0 %v29
  %292 = vmatprep.subr.mxu0 0.0
  %293 = vmatpush1.msra.mxu0 %v28
  %294 = vmatprep.subr.mxu0 0.0
  %295 = vmatpush1.msra.mxu0 %v27
  %296 = vmatprep.subr.mxu0 0.0
  %297 = vmatpush1.msra.mxu0 %v26
  %298 = vmatprep.subr.mxu0 0.0
  %299 = vmatpush1.msra.mxu0 %v25
  %300 = vmatprep.subr.mxu0 0.0
  %301 = vmatpush1.msra.mxu0 %v24
  %302 = vmatprep.subr.mxu0 0.0
  %303 = vmatpush1.msra.mxu0 %v23
  %304 = vmatprep.subr.mxu0 0.0
  %305 = vmatpush1.msra.mxu0 %v22
  %306 = vmatprep.subr.mxu0 0.0
  %307 = vmatpush1.msra.mxu0 %v21
  %308 = vmatprep.subr.mxu0 0.0
  %309 = vmatpush1.msra.mxu0 %v20
  %310 = vmatprep.subr.mxu0 0.0
  %311 = vmatpush1.msra.mxu0 %v19
  %312 = vmatprep.subr.mxu0 0.0
  %313 = vmatpush1.msra.mxu0 %v18
  %314 = vmatprep.subr.mxu0 0.0
  %315 = vmatpush2.msra.mxu0 0.0
  %316 = vmatprep.subr.mxu0 0.0
  %317 = vmatpush2.msra.mxu0 0.0
  %318 = vmatprep.subr.mxu0 0.0
  %319 = vmatpush2.msra.mxu0 0.0
  %320 = vmatprep.subr.mxu0 0.0
  %321 = vmatpush2.msra.mxu0 0.0
  %322 = vmatprep.subr.mxu0 0.0
  %323 = vmatpush2.msra.mxu0 0.0
  %324 = vmatprep.subr.mxu0 0.0
  %325 = vmatpush2.msra.mxu0 0.0
  %326 = vmatprep.subr.mxu0 0.0
  %327 = vmatpush2.msra.mxu0 0.0
  %328 = vmatprep.subr.mxu0 0.0
  %329 = vmatpush2.msra.mxu0 0.0
  %330 = vmatprep.subr.mxu0 0.0
  %331 = vmatpush2.msra.mxu0 0.0
  %332 = vmatprep.subr.mxu0 0.0
  %333 = vmatpush2.msra.mxu0 0.0
  %334 = vmatprep.subr.mxu0 0.0
  %335 = vmatpush2.msra.mxu0 0.0
  %336 = vmatprep.subr.mxu0 0.0
  %337 = vmatpush2.msra.mxu0 0.0
  %338 = vmatprep.subr.mxu0 0.0
  %339 = vmatpush2.msra.mxu0 0.0
  %340 = vmatprep.subr.mxu0 0.0
  %341 = vmatpush2.msra.mxu0 0.0
  %342 = vmatprep.subr.mxu0 0.0
  %343 = vmatpush2.msra.mxu0 0.0
  %344 = vmatprep.subr.mxu0 0.0
  %345 = vmatpush2.msra.mxu0 0.0
  %346 = vmatprep.mubr.f32.mxu0 0.0
  %347 = vmatmul.mubr.f32.gmra.mxu0 %v266
  %v348 = vpop.f32.mrf.mxu0
  %v349 = vadd.f32 0.0, %v348
  %v350 = vpop.f32.mrf.mxu0
  %351 = vmatprep.mubr.f32.mxu0 0.0
  %352 = vmatmul.mubr.f32.gmra.mxu0 %v267
  %v353 = vpop.f32.mrf.mxu0
  %v354 = vadd.f32 0.0, %v353
  %v355 = vpop.f32.mrf.mxu0
  %356 = vmatprep.mubr.f32.mxu0 0.0
  %357 = vmatmul.mubr.f32.gmra.mxu0 %v268
  %v358 = vpop.f32.mrf.mxu0
  %v359 = vadd.f32 0.0, %v358
  %v360 = vpop.f32.mrf.mxu0
  %361 = vmatprep.mubr.f32.mxu0 0.0
  %362 = vmatmul.mubr.f32.gmra.mxu0 %v269
  %v363 = vpop.f32.mrf.mxu0
  %v364 = vadd.f32 0.0, %v363
  %v365 = vpop.f32.mrf.mxu0
  %366 = vmatprep.mubr.f32.mxu0 0.0
  %367 = vmatmul.mubr.f32.gmra.mxu0 %v270
  %v368 = vpop.f32.mrf.mxu0
  %v369 = vadd.f32 0.0, %v368
  %v370 = vpop.f32.mrf.mxu0
  %371 = vmatprep.mubr.f32.mxu0 0.0
  %372 = vmatmul.mubr.f32.gmra.mxu0 %v271
  %v373 = vpop.f32.mrf.mxu0
  %v374 = vadd.f32 0.0, %v373
  %v375 = vpop.f32.mrf.mxu0
  %376 = vmatprep.mubr.f32.mxu0 0.0
  %377 = vmatmul.mubr.f32.gmra.mxu0 %v272
  %v378 = vpop.f32.mrf.mxu0
  %v379 = vadd.f32 0.0, %v378
  %v380 = vpop.f32.mrf.mxu0
  %381 = vmatprep.mubr.f32.mxu0 0.0
  %382 = vmatmul.mubr.f32.gmra.mxu0 %v273
  %v383 = vpop.f32.mrf.mxu0
  %v384 = vadd.f32 0.0, %v383
  %v385 = vpop.f32.mrf.mxu0
  %386 = vmatprep.mubr.f32.mxu0 0.0
  %387 = vmatmul.mubr.f32.gmra.mxu0 %v274
  %v388 = vpop.f32.mrf.mxu0
  %v389 = vadd.f32 0.0, %v388
  %v390 = vpop.f32.mrf.mxu0
  %391 = vmatprep.mubr.f32.mxu0 0.0
  %392 = vmatmul.mubr.f32.gmra.mxu0 %v275
  %v393 = vpop.f32.mrf.mxu0
  %v394 = vadd.f32 0.0, %v393
  %v395 = vpop.f32.mrf.mxu0
  %396 = vmatprep.mubr.f32.mxu0 0.0
  %397 = vmatmul.mubr.f32.gmra.mxu0 %v276
  %v398 = vpop.f32.mrf.mxu0
  %v399 = vadd.f32 0.0, %v398
  %v400 = vpop.f32.mrf.mxu0
  %401 = vmatprep.mubr.f32.mxu0 0.0
  %402 = vmatmul.mubr.f32.gmra.mxu0 %v277
  %v403 = vpop.f32.mrf.mxu0
  %v404 = vadd.f32 0.0, %v403
  %v405 = vpop.f32.mrf.mxu0
  %406 = vmatprep.mubr.f32.mxu0 0.0
  %407 = vmatmul.mubr.f32.gmra.mxu0 %v278
  %v408 = vpop.f32.mrf.mxu0
  %v409 = vadd.f32 0.0, %v408
  %v410 = vpop.f32.mrf.mxu0
  %411 = vmatprep.mubr.f32.mxu0 0.0
  %412 = vmatmul.mubr.f32.gmra.mxu0 %v279
  %v413 = vpop.f32.mrf.mxu0
  %v414 = vadd.f32 0.0, %v413
  %v415 = vpop.f32.mrf.mxu0
  %416 = vmatprep.mubr.f32.mxu0 0.0
  %417 = vmatmul.mubr.f32.gmra.mxu0 %v280
  %v418 = vpop.f32.mrf.mxu0
  %v419 = vadd.f32 0.0, %v418
  %v420 = vpop.f32.mrf.mxu0
  %421 = vmatprep.mubr.f32.mxu0 0.0
  %422 = vmatmul.mubr.f32.gmra.mxu0 %v281
  %v423 = vpop.f32.mrf.mxu0
  %v424 = vadd.f32 0.0, %v423
  %v425 = vpop.f32.mrf.mxu0
  %426 = vdwg.mxu0
  %v427 = vmax.f32 %v155, %v349
  %v428 = vmax.f32 %v160, %v354
  %v429 = vmax.f32 %v165, %v359
  %v430 = vmax.f32 %v170, %v364
  %v431 = vmax.f32 %v175, %v369
  %v432 = vmax.f32 %v180, %v374
  %v433 = vmax.f32 %v185, %v379
  %v434 = vmax.f32 %v190, %v384
  %v435 = vmax.f32 %v195, %v389
  %v436 = vmax.f32 %v200, %v394
  %v437 = vmax.f32 %v205, %v399
  %v438 = vmax.f32 %v210, %v404
  %v439 = vmax.f32 %v215, %v409
  %v440 = vmax.f32 %v220, %v414
  %v441 = vmax.f32 %v225, %v419
  %v442 = vmax.f32 %v230, %v424
  %s443 = scalar_lea.vmem %s0, 256
  %v444 = vld [vmem:[%s443] sm:$0xff]
  %v445 = vld [vmem:[%s443 + $0x8] sm:$0xff]
  %v446 = vld [vmem:[%s443 + $0x10] sm:$0xff]
  %v447 = vld [vmem:[%s443 + $0x18] sm:$0xff]
  %v448 = vld [vmem:[%s443 + $0x20] sm:$0xff]
  %v449 = vld [vmem:[%s443 + $0x28] sm:$0xff]
  %v450 = vld [vmem:[%s443 + $0x30] sm:$0xff]
  %v451 = vld [vmem:[%s443 + $0x38] sm:$0xff]
  %v452 = vld [vmem:[%s443 + $0x40] sm:$0xff]
  %v453 = vld [vmem:[%s443 + $0x48] sm:$0xff]
  %v454 = vld [vmem:[%s443 + $0x50] sm:$0xff]
  %v455 = vld [vmem:[%s443 + $0x58] sm:$0xff]
  %v456 = vld [vmem:[%s443 + $0x60] sm:$0xff]
  %v457 = vld [vmem:[%s443 + $0x68] sm:$0xff]
  %v458 = vld [vmem:[%s443 + $0x70] sm:$0xff]
  %v459 = vld [vmem:[%s443 + $0x78] sm:$0xff]
  %v460 = vsub.f32 %v444, %v54
  %v461 = vsub.f32 %v445, %v54
  %v462 = vsub.f32 %v446, %v54
  %v463 = vsub.f32 %v447, %v54
  %v464 = vsub.f32 %v448, %v54
  %v465 = vsub.f32 %v449, %v54
  %v466 = vsub.f32 %v450, %v54
  %v467 = vsub.f32 %v451, %v54
  %v468 = vsub.f32 %v452, %v54
  %v469 = vsub.f32 %v453, %v54
  %v470 = vsub.f32 %v454, %v54
  %v471 = vsub.f32 %v455, %v54
  %v472 = vsub.f32 %v456, %v54
  %v473 = vsub.f32 %v457, %v54
  %v474 = vsub.f32 %v458, %v54
  %v475 = vsub.f32 %v459, %v54
  %v476 = vmax.f32 %v460, 0.0
  %v477 = vmax.f32 %v461, 0.0
  %v478 = vmax.f32 %v462, 0.0
  %v479 = vmax.f32 %v463, 0.0
  %v480 = vmax.f32 %v464, 0.0
  %v481 = vmax.f32 %v465, 0.0
  %v482 = vmax.f32 %v466, 0.0
  %v483 = vmax.f32 %v467, 0.0
  %v484 = vmax.f32 %v468, 0.0
  %v485 = vmax.f32 %v469, 0.0
  %v486 = vmax.f32 %v470, 0.0
  %v487 = vmax.f32 %v471, 0.0
  %v488 = vmax.f32 %v472, 0.0
  %v489 = vmax.f32 %v473, 0.0
  %v490 = vmax.f32 %v474, 0.0
  %v491 = vmax.f32 %v475, 0.0
  %492 = vmatprep.subr.mxu0 0.0
  %493 = vmatpush1.msra.mxu0 %v33
  %494 = vmatprep.subr.mxu0 0.0
  %495 = vmatpush1.msra.mxu0 %v32
  %496 = vmatprep.subr.mxu0 0.0
  %497 = vmatpush1.msra.mxu0 %v31
  %498 = vmatprep.subr.mxu0 0.0
  %499 = vmatpush1.msra.mxu0 %v30
  %500 = vmatprep.subr.mxu0 0.0
  %501 = vmatpush1.msra.mxu0 %v29
  %502 = vmatprep.subr.mxu0 0.0
  %503 = vmatpush1.msra.mxu0 %v28
  %504 = vmatprep.subr.mxu0 0.0
  %505 = vmatpush1.msra.mxu0 %v27
  %506 = vmatprep.subr.mxu0 0.0
  %507 = vmatpush1.msra.mxu0 %v26
  %508 = vmatprep.subr.mxu0 0.0
  %509 = vmatpush1.msra.mxu0 %v25
  %510 = vmatprep.subr.mxu0 0.0
  %511 = vmatpush1.msra.mxu0 %v24
  %512 = vmatprep.subr.mxu0 0.0
  %513 = vmatpush1.msra.mxu0 %v23
  %514 = vmatprep.subr.mxu0 0.0
  %515 = vmatpush1.msra.mxu0 %v22
  %516 = vmatprep.subr.mxu0 0.0
  %517 = vmatpush1.msra.mxu0 %v21
  %518 = vmatprep.subr.mxu0 0.0
  %519 = vmatpush1.msra.mxu0 %v20
  %520 = vmatprep.subr.mxu0 0.0
  %521 = vmatpush1.msra.mxu0 %v19
  %522 = vmatprep.subr.mxu0 0.0
  %523 = vmatpush1.msra.mxu0 %v18
  %524 = vmatprep.subr.mxu0 0.0
  %525 = vmatpush2.msra.mxu0 0.0
  %526 = vmatprep.subr.mxu0 0.0
  %527 = vmatpush2.msra.mxu0 0.0
  %528 = vmatprep.subr.mxu0 0.0
  %529 = vmatpush2.msra.mxu0 0.0
  %530 = vmatprep.subr.mxu0 0.0
  %531 = vmatpush2.msra.mxu0 0.0
  %532 = vmatprep.subr.mxu0 0.0
  %533 = vmatpush2.msra.mxu0 0.0
  %534 = vmatprep.subr.mxu0 0.0
  %535 = vmatpush2.msra.mxu0 0.0
  %536 = vmatprep.subr.mxu0 0.0
  %537 = vmatpush2.msra.mxu0 0.0
  %538 = vmatprep.subr.mxu0 0.0
  %539 = vmatpush2.msra.mxu0 0.0
  %540 = vmatprep.subr.mxu0 0.0
  %541 = vmatpush2.msra.mxu0 0.0
  %542 = vmatprep.subr.mxu0 0.0
  %543 = vmatpush2.msra.mxu0 0.0
  %544 = vmatprep.subr.mxu0 0.0
  %545 = vmatpush2.msra.mxu0 0.0
  %546 = vmatprep.subr.mxu0 0.0
  %547 = vmatpush2.msra.mxu0 0.0
  %548 = vmatprep.subr.mxu0 0.0
  %549 = vmatpush2.msra.mxu0 0.0
  %550 = vmatprep.subr.mxu0 0.0
  %551 = vmatpush2.msra.mxu0 0.0
  %552 = vmatprep.subr.mxu0 0.0
  %553 = vmatpush2.msra.mxu0 0.0
  %554 = vmatprep.subr.mxu0 0.0
  %555 = vmatpush2.msra.mxu0 0.0
  %556 = vmatprep.mubr.f32.mxu0 0.0
  %557 = vmatmul.mubr.f32.gmra.mxu0 %v476
  %v558 = vpop.f32.mrf.mxu0
  %v559 = vadd.f32 0.0, %v558
  %v560 = vpop.f32.mrf.mxu0
  %561 = vmatprep.mubr.f32.mxu0 0.0
  %562 = vmatmul.mubr.f32.gmra.mxu0 %v477
  %v563 = vpop.f32.mrf.mxu0
  %v564 = vadd.f32 0.0, %v563
  %v565 = vpop.f32.mrf.mxu0
  %566 = vmatprep.mubr.f32.mxu0 0.0
  %567 = vmatmul.mubr.f32.gmra.mxu0 %v478
  %v568 = vpop.f32.mrf.mxu0
  %v569 = vadd.f32 0.0, %v568
  %v570 = vpop.f32.mrf.mxu0
  %571 = vmatprep.mubr.f32.mxu0 0.0
  %572 = vmatmul.mubr.f32.gmra.mxu0 %v479
  %v573 = vpop.f32.mrf.mxu0
  %v574 = vadd.f32 0.0, %v573
  %v575 = vpop.f32.mrf.mxu0
  %576 = vmatprep.mubr.f32.mxu0 0.0
  %577 = vmatmul.mubr.f32.gmra.mxu0 %v480
  %v578 = vpop.f32.mrf.mxu0
  %v579 = vadd.f32 0.0, %v578
  %v580 = vpop.f32.mrf.mxu0
  %581 = vmatprep.mubr.f32.mxu0 0.0
  %582 = vmatmul.mubr.f32.gmra.mxu0 %v481
  %v583 = vpop.f32.mrf.mxu0
  %v584 = vadd.f32 0.0, %v583
  %v585 = vpop.f32.mrf.mxu0
  %586 = vmatprep.mubr.f32.mxu0 0.0
  %587 = vmatmul.mubr.f32.gmra.mxu0 %v482
  %v588 = vpop.f32.mrf.mxu0
  %v589 = vadd.f32 0.0, %v588
  %v590 = vpop.f32.mrf.mxu0
  %591 = vmatprep.mubr.f32.mxu0 0.0
  %592 = vmatmul.mubr.f32.gmra.mxu0 %v483
  %v593 = vpop.f32.mrf.mxu0
  %v594 = vadd.f32 0.0, %v593
  %v595 = vpop.f32.mrf.mxu0
  %596 = vmatprep.mubr.f32.mxu0 0.0
  %597 = vmatmul.mubr.f32.gmra.mxu0 %v484
  %v598 = vpop.f32.mrf.mxu0
  %v599 = vadd.f32 0.0, %v598
  %v600 = vpop.f32.mrf.mxu0
  %601 = vmatprep.mubr.f32.mxu0 0.0
  %602 = vmatmul.mubr.f32.gmra.mxu0 %v485
  %v603 = vpop.f32.mrf.mxu0
  %v604 = vadd.f32 0.0, %v603
  %v605 = vpop.f32.mrf.mxu0
  %606 = vmatprep.mubr.f32.mxu0 0.0
  %607 = vmatmul.mubr.f32.gmra.mxu0 %v486
  %v608 = vpop.f32.mrf.mxu0
  %v609 = vadd.f32 0.0, %v608
  %v610 = vpop.f32.mrf.mxu0
  %611 = vmatprep.mubr.f32.mxu0 0.0
  %612 = vmatmul.mubr.f32.gmra.mxu0 %v487
  %v613 = vpop.f32.mrf.mxu0
  %v614 = vadd.f32 0.0, %v613
  %v615 = vpop.f32.mrf.mxu0
  %616 = vmatprep.mubr.f32.mxu0 0.0
  %617 = vmatmul.mubr.f32.gmra.mxu0 %v488
  %v618 = vpop.f32.mrf.mxu0
  %v619 = vadd.f32 0.0, %v618
  %v620 = vpop.f32.mrf.mxu0
  %621 = vmatprep.mubr.f32.mxu0 0.0
  %622 = vmatmul.mubr.f32.gmra.mxu0 %v489
  %v623 = vpop.f32.mrf.mxu0
  %v624 = vadd.f32 0.0, %v623
  %v625 = vpop.f32.mrf.mxu0
  %626 = vmatprep.mubr.f32.mxu0 0.0
  %627 = vmatmul.mubr.f32.gmra.mxu0 %v490
  %v628 = vpop.f32.mrf.mxu0
  %v629 = vadd.f32 0.0, %v628
  %v630 = vpop.f32.mrf.mxu0
  %631 = vmatprep.mubr.f32.mxu0 0.0
  %632 = vmatmul.mubr.f32.gmra.mxu0 %v491
  %v633 = vpop.f32.mrf.mxu0
  %v634 = vadd.f32 0.0, %v633
  %v635 = vpop.f32.mrf.mxu0
  %636 = vdwg.mxu0
  %v637 = vmax.f32 %v427, %v559
  %v638 = vmax.f32 %v428, %v564
  %v639 = vmax.f32 %v429, %v569
  %v640 = vmax.f32 %v430, %v574
  %v641 = vmax.f32 %v431, %v579
  %v642 = vmax.f32 %v432, %v584
  %v643 = vmax.f32 %v433, %v589
  %v644 = vmax.f32 %v434, %v594
  %v645 = vmax.f32 %v435, %v599
  %v646 = vmax.f32 %v436, %v604
  %v647 = vmax.f32 %v437, %v609
  %v648 = vmax.f32 %v438, %v614
  %v649 = vmax.f32 %v439, %v619
  %v650 = vmax.f32 %v440, %v624
  %v651 = vmax.f32 %v441, %v629
  %v652 = vmax.f32 %v442, %v634
  %s653 = scalar_lea.vmem %s0, 384
  %v654 = vld [vmem:[%s653] sm:$0xff]
  %v655 = vld [vmem:[%s653 + $0x8] sm:$0xff]
  %v656 = vld [vmem:[%s653 + $0x10] sm:$0xff]
  %v657 = vld [vmem:[%s653 + $0x18] sm:$0xff]
  %v658 = vld [vmem:[%s653 + $0x20] sm:$0xff]
  %v659 = vld [vmem:[%s653 + $0x28] sm:$0xff]
  %v660 = vld [vmem:[%s653 + $0x30] sm:$0xff]
  %v661 = vld [vmem:[%s653 + $0x38] sm:$0xff]
  %v662 = vld [vmem:[%s653 + $0x40] sm:$0xff]
  %v663 = vld [vmem:[%s653 + $0x48] sm:$0xff]
  %v664 = vld [vmem:[%s653 + $0x50] sm:$0xff]
  %v665 = vld [vmem:[%s653 + $0x58] sm:$0xff]
  %v666 = vld [vmem:[%s653 + $0x60] sm:$0xff]
  %v667 = vld [vmem:[%s653 + $0x68] sm:$0xff]
  %v668 = vld [vmem:[%s653 + $0x70] sm:$0xff]
  %v669 = vld [vmem:[%s653 + $0x78] sm:$0xff]
  %v670 = vsub.f32 %v654, %v54
  %v671 = vsub.f32 %v655, %v54
  %v672 = vsub.f32 %v656, %v54
  %v673 = vsub.f32 %v657, %v54
  %v674 = vsub.f32 %v658, %v54
  %v675 = vsub.f32 %v659, %v54
  %v676 = vsub.f32 %v660, %v54
  %v677 = vsub.f32 %v661, %v54
  %v678 = vsub.f32 %v662, %v54
  %v679 = vsub.f32 %v663, %v54
  %v680 = vsub.f32 %v664, %v54
  %v681 = vsub.f32 %v665, %v54
  %v682 = vsub.f32 %v666, %v54
  %v683 = vsub.f32 %v667, %v54
  %v684 = vsub.f32 %v668, %v54
  %v685 = vsub.f32 %v669, %v54
  %v686 = vmax.f32 %v670, 0.0
  %v687 = vmax.f32 %v671, 0.0
  %v688 = vmax.f32 %v672, 0.0
  %v689 = vmax.f32 %v673, 0.0
  %v690 = vmax.f32 %v674, 0.0
  %v691 = vmax.f32 %v675, 0.0
  %v692 = vmax.f32 %v676, 0.0
  %v693 = vmax.f32 %v677, 0.0
  %v694 = vmax.f32 %v678, 0.0
  %v695 = vmax.f32 %v679, 0.0
  %v696 = vmax.f32 %v680, 0.0
  %v697 = vmax.f32 %v681, 0.0
  %v698 = vmax.f32 %v682, 0.0
  %v699 = vmax.f32 %v683, 0.0
  %v700 = vmax.f32 %v684, 0.0
  %v701 = vmax.f32 %v685, 0.0
  %702 = vmatprep.subr.mxu0 0.0
  %703 = vmatpush1.msra.mxu0 %v33
  %704 = vmatprep.subr.mxu0 0.0
  %705 = vmatpush1.msra.mxu0 %v32
  %706 = vmatprep.subr.mxu0 0.0
  %707 = vmatpush1.msra.mxu0 %v31
  %708 = vmatprep.subr.mxu0 0.0
  %709 = vmatpush1.msra.mxu0 %v30
  %710 = vmatprep.subr.mxu0 0.0
  %711 = vmatpush1.msra.mxu0 %v29
  %712 = vmatprep.subr.mxu0 0.0
  %713 = vmatpush1.msra.mxu0 %v28
  %714 = vmatprep.subr.mxu0 0.0
  %715 = vmatpush1.msra.mxu0 %v27
  %716 = vmatprep.subr.mxu0 0.0
  %717 = vmatpush1.msra.mxu0 %v26
  %718 = vmatprep.subr.mxu0 0.0
  %719 = vmatpush1.msra.mxu0 %v25
  %720 = vmatprep.subr.mxu0 0.0
  %721 = vmatpush1.msra.mxu0 %v24
  %722 = vmatprep.subr.mxu0 0.0
  %723 = vmatpush1.msra.mxu0 %v23
  %724 = vmatprep.subr.mxu0 0.0
  %725 = vmatpush1.msra.mxu0 %v22
  %726 = vmatprep.subr.mxu0 0.0
  %727 = vmatpush1.msra.mxu0 %v21
  %728 = vmatprep.subr.mxu0 0.0
  %729 = vmatpush1.msra.mxu0 %v20
  %730 = vmatprep.subr.mxu0 0.0
  %731 = vmatpush1.msra.mxu0 %v19
  %732 = vmatprep.subr.mxu0 0.0
  %733 = vmatpush1.msra.mxu0 %v18
  %734 = vmatprep.subr.mxu0 0.0
  %735 = vmatpush2.msra.mxu0 0.0
  %736 = vmatprep.subr.mxu0 0.0
  %737 = vmatpush2.msra.mxu0 0.0
  %738 = vmatprep.subr.mxu0 0.0
  %739 = vmatpush2.msra.mxu0 0.0
  %740 = vmatprep.subr.mxu0 0.0
  %741 = vmatpush2.msra.mxu0 0.0
  %742 = vmatprep.subr.mxu0 0.0
  %743 = vmatpush2.msra.mxu0 0.0
  %744 = vmatprep.subr.mxu0 0.0
  %745 = vmatpush2.msra.mxu0 0.0
  %746 = vmatprep.subr.mxu0 0.0
  %747 = vmatpush2.msra.mxu0 0.0
  %748 = vmatprep.subr.mxu0 0.0
  %749 = vmatpush2.msra.mxu0 0.0
  %750 = vmatprep.subr.mxu0 0.0
  %751 = vmatpush2.msra.mxu0 0.0
  %752 = vmatprep.subr.mxu0 0.0
  %753 = vmatpush2.msra.mxu0 0.0
  %754 = vmatprep.subr.mxu0 0.0
  %755 = vmatpush2.msra.mxu0 0.0
  %756 = vmatprep.subr.mxu0 0.0
  %757 = vmatpush2.msra.mxu0 0.0
  %758 = vmatprep.subr.mxu0 0.0
  %759 = vmatpush2.msra.mxu0 0.0
  %760 = vmatprep.subr.mxu0 0.0
  %761 = vmatpush2.msra.mxu0 0.0
  %762 = vmatprep.subr.mxu0 0.0
  %763 = vmatpush2.msra.mxu0 0.0
  %764 = vmatprep.subr.mxu0 0.0
  %765 = vmatpush2.msra.mxu0 0.0
  %766 = vmatprep.mubr.f32.mxu0 0.0
  %767 = vmatmul.mubr.f32.gmra.mxu0 %v686
  %v768 = vpop.f32.mrf.mxu0
  %v769 = vadd.f32 0.0, %v768
  %v770 = vpop.f32.mrf.mxu0
  %771 = vmatprep.mubr.f32.mxu0 0.0
  %772 = vmatmul.mubr.f32.gmra.mxu0 %v687
  %v773 = vpop.f32.mrf.mxu0
  %v774 = vadd.f32 0.0, %v773
  %v775 = vpop.f32.mrf.mxu0
  %776 = vmatprep.mubr.f32.mxu0 0.0
  %777 = vmatmul.mubr.f32.gmra.mxu0 %v688
  %v778 = vpop.f32.mrf.mxu0
  %v779 = vadd.f32 0.0, %v778
  %v780 = vpop.f32.mrf.mxu0
  %781 = vmatprep.mubr.f32.mxu0 0.0
  %782 = vmatmul.mubr.f32.gmra.mxu0 %v689
  %v783 = vpop.f32.mrf.mxu0
  %v784 = vadd.f32 0.0, %v783
  %v785 = vpop.f32.mrf.mxu0
  %786 = vmatprep.mubr.f32.mxu0 0.0
  %787 = vmatmul.mubr.f32.gmra.mxu0 %v690
  %v788 = vpop.f32.mrf.mxu0
  %v789 = vadd.f32 0.0, %v788
  %v790 = vpop.f32.mrf.mxu0
  %791 = vmatprep.mubr.f32.mxu0 0.0
  %792 = vmatmul.mubr.f32.gmra.mxu0 %v691
  %v793 = vpop.f32.mrf.mxu0
  %v794 = vadd.f32 0.0, %v793
  %v795 = vpop.f32.mrf.mxu0
  %796 = vmatprep.mubr.f32.mxu0 0.0
  %797 = vmatmul.mubr.f32.gmra.mxu0 %v692
  %v798 = vpop.f32.mrf.mxu0
  %v799 = vadd.f32 0.0, %v798
  %v800 = vpop.f32.mrf.mxu0
  %801 = vmatprep.mubr.f32.mxu0 0.0
  %802 = vmatmul.mubr.f32.gmra.mxu0 %v693
  %v803 = vpop.f32.mrf.mxu0
  %v804 = vadd.f32 0.0, %v803
  %v805 = vpop.f32.mrf.mxu0
  %806 = vmatprep.mubr.f32.mxu0 0.0
  %807 = vmatmul.mubr.f32.gmra.mxu0 %v694
  %v808 = vpop.f32.mrf.mxu0
  %v809 = vadd.f32 0.0, %v808
  %v810 = vpop.f32.mrf.mxu0
  %811 = vmatprep.mubr.f32.mxu0 0.0
  %812 = vmatmul.mubr.f32.gmra.mxu0 %v695
  %v813 = vpop.f32.mrf.mxu0
  %v814 = vadd.f32 0.0, %v813
  %v815 = vpop.f32.mrf.mxu0
  %816 = vmatprep.mubr.f32.mxu0 0.0
  %817 = vmatmul.mubr.f32.gmra.mxu0 %v696
  %v818 = vpop.f32.mrf.mxu0
  %v819 = vadd.f32 0.0, %v818
  %v820 = vpop.f32.mrf.mxu0
  %821 = vmatprep.mubr.f32.mxu0 0.0
  %822 = vmatmul.mubr.f32.gmra.mxu0 %v697
  %v823 = vpop.f32.mrf.mxu0
  %v824 = vadd.f32 0.0, %v823
  %v825 = vpop.f32.mrf.mxu0
  %826 = vmatprep.mubr.f32.mxu0 0.0
  %827 = vmatmul.mubr.f32.gmra.mxu0 %v698
  %v828 = vpop.f32.mrf.mxu0
  %v829 = vadd.f32 0.0, %v828
  %v830 = vpop.f32.mrf.mxu0
  %831 = vmatprep.mubr.f32.mxu0 0.0
  %832 = vmatmul.mubr.f32.gmra.mxu0 %v699
  %v833 = vpop.f32.mrf.mxu0
  %v834 = vadd.f32 0.0, %v833
  %v835 = vpop.f32.mrf.mxu0
  %836 = vmatprep.mubr.f32.mxu0 0.0
  %837 = vmatmul.mubr.f32.gmra.mxu0 %v700
  %v838 = vpop.f32.mrf.mxu0
  %v839 = vadd.f32 0.0, %v838
  %v840 = vpop.f32.mrf.mxu0
  %841 = vmatprep.mubr.f32.mxu0 0.0
  %842 = vmatmul.mubr.f32.gmra.mxu0 %v701
  %v843 = vpop.f32.mrf.mxu0
  %v844 = vadd.f32 0.0, %v843
  %v845 = vpop.f32.mrf.mxu0
  %846 = vdwg.mxu0
  %v847 = vmax.f32 %v637, %v769
  %v848 = vmax.f32 %v638, %v774
  %v849 = vmax.f32 %v639, %v779
  %v850 = vmax.f32 %v640, %v784
  %v851 = vmax.f32 %v641, %v789
  %v852 = vmax.f32 %v642, %v794
  %v853 = vmax.f32 %v643, %v799
  %v854 = vmax.f32 %v644, %v804
  %v855 = vmax.f32 %v645, %v809
  %v856 = vmax.f32 %v646, %v814
  %v857 = vmax.f32 %v647, %v819
  %v858 = vmax.f32 %v648, %v824
  %v859 = vmax.f32 %v649, %v829
  %v860 = vmax.f32 %v650, %v834
  %v861 = vmax.f32 %v651, %v839
  %v862 = vmax.f32 %v652, %v844
  %v863 = vld [vmem:[%s3] sm:$0x1]
  %v865 = vlaneseq
  %v866 = vshrl.u32 %v865, 7
  %v867 = vsub.s32 0, %v866
  %v868 = vrot.slane %v863, %v867
  %v870 = vadd.f32 %v847, %v868
  %v871 = vadd.f32 %v848, %v868
  %v872 = vadd.f32 %v849, %v868
  %v873 = vadd.f32 %v850, %v868
  %v874 = vadd.f32 %v851, %v868
  %v875 = vadd.f32 %v852, %v868
  %v876 = vadd.f32 %v853, %v868
  %v877 = vadd.f32 %v854, %v868
  %v878 = vadd.f32 %v855, %v868
  %v879 = vadd.f32 %v856, %v868
  %v880 = vadd.f32 %v857, %v868
  %v881 = vadd.f32 %v858, %v868
  %v882 = vadd.f32 %v859, %v868
  %v883 = vadd.f32 %v860, %v868
  %v884 = vadd.f32 %v861, %v868
  %v885 = vadd.f32 %v862, %v868
  %886 = vst [vmem:[%s4] sm:$0xff] %v870
  %887 = vst [vmem:[%s4 + $0x8] sm:$0xff] %v871
  %888 = vst [vmem:[%s4 + $0x10] sm:$0xff] %v872
  %889 = vst [vmem:[%s4 + $0x18] sm:$0xff] %v873
  %890 = vst [vmem:[%s4 + $0x20] sm:$0xff] %v874
  %891 = vst [vmem:[%s4 + $0x28] sm:$0xff] %v875
  %892 = vst [vmem:[%s4 + $0x30] sm:$0xff] %v876
  %893 = vst [vmem:[%s4 + $0x38] sm:$0xff] %v877
  %894 = vst [vmem:[%s4 + $0x40] sm:$0xff] %v878
  %895 = vst [vmem:[%s4 + $0x48] sm:$0xff] %v879
  %896 = vst [vmem:[%s4 + $0x50] sm:$0xff] %v880
  %897 = vst [vmem:[%s4 + $0x58] sm:$0xff] %v881
  %898 = vst [vmem:[%s4 + $0x60] sm:$0xff] %v882
  %899 = vst [vmem:[%s4 + $0x68] sm:$0xff] %v883
  %900 = vst [vmem:[%s4 + $0x70] sm:$0xff] %v884
  %901 = vst [vmem:[%s4 + $0x78] sm:$0xff] %v885
  // Predicated region
  $region18: #{transition_down.1} parent=0 // pred_check
    _
  $region19: #{transition_down.1} parent=0 // pred_check_branch
    %903 = sbr.rel (0) target = $region21
  $region20: #{transition_down.1} parent=0 // pred_region
    _
  $region21: #{transition_down.1} parent=0 // pred_fallthru
    _
  // Predicated region
  $region22: #{transition_down.1} parent=0 // pred_check
    _
  $region23: #{transition_down.1} parent=0 // pred_check_branch
    %905 = sbr.rel (0) target = $region25
  $region24: #{transition_down.1} parent=0 // pred_region
    _
  $region25: #{transition_down.1} parent=0 // pred_fallthru
    _

</llo_original>
